<compile_context>
chip_gen: v7x
topology: tpu7x:2x2x1
jax: 0.10.0
libtpu: 0.0.40
codegen_flags: <defaults>
</compile_context>

<pallas_src>
from functools import partial

import jax
import jax.numpy as jnp
from jax.experimental import pallas as pl
from jax.experimental.pallas import tpu as pltpu


# ----------------------------------------------------------------------------
# Kernel: identity copy of the current lane/sublane-dense tile.
# ----------------------------------------------------------------------------
def _copy_kernel(x_ref, o_ref):
    o_ref[...] = x_ref[...]


# ----------------------------------------------------------------------------
# Tiling plan: view `total` elements as (rows, lanes) and pick a block size.
# ----------------------------------------------------------------------------
_PER_BLOCK_BYTES = 4 * 1024 * 1024     # 4 MiB/block -> 4 double-buffered bufs = 16 MiB
_VMEM_LIMIT_BYTES = 32 * 1024 * 1024   # fits scoped VMEM on v5e/v6e/v7x


def _plan_slab(total, dtype):
    """Return (rows, lanes, block_rows) for a lane-dense slab, or None."""
    itemsize = jnp.dtype(dtype).itemsize
    sub = max(8, 32 // max(itemsize, 1))      # 8 f32 / 16 bf16 / 32 int8 sublanes
    for lanes in (4096, 2048, 1024, 512, 256, 128):
        if total % lanes:
            continue
        rows = total // lanes
        if rows == 0 or rows % sub:
            continue
        # Largest divisor of `rows` that is a multiple of `sub` and keeps one
        # block within the per-block VMEM budget.
        max_rows = max(sub, (_PER_BLOCK_BYTES // (lanes * itemsize)) // sub * sub)
        for cand in range(min(rows, max_rows), 0, -sub):
            if rows % cand == 0:
                return rows, lanes, cand
    return None


# ----------------------------------------------------------------------------
# pallas_call wrapper: tiled identity copy over the (rows, lanes) slab.
# ----------------------------------------------------------------------------
def _tiled_identity_copy(slab, block_rows):
    rows, lanes = slab.shape
    grid = rows // block_rows
    return pl.pallas_call(
        _copy_kernel,
        out_shape=jax.ShapeDtypeStruct((rows, lanes), slab.dtype),
        grid_spec=pltpu.PrefetchScalarGridSpec(
            num_scalar_prefetch=0,
            grid=(grid,),
            in_specs=[pl.BlockSpec((block_rows, lanes), lambda i: (i, 0))],
            out_specs=pl.BlockSpec((block_rows, lanes), lambda i: (i, 0)),
        ),
        compiler_params=pltpu.CompilerParams(
            dimension_semantics=("parallel",),
            vmem_limit_bytes=_VMEM_LIMIT_BYTES,
        ),
    )(slab)


# ----------------------------------------------------------------------------
# Forward (jitted so the surrounding reshapes are zero-cost bitcasts).
# ----------------------------------------------------------------------------
@partial(jax.jit, static_argnames=("target_shape",))
def _reshape_forward(x, target_shape):
    total = x.size
    plan = _plan_slab(total, x.dtype)
    if plan is None:
        # Reshape is metadata-only; no lane-dense tiling exists, so don't pay
        # for masked partial stores -- just return the view.
        return jnp.reshape(x, target_shape)
    rows, lanes, block_rows = plan
    slab = jnp.reshape(x, (rows, lanes))          # bitcast under jit
    slab = _tiled_identity_copy(slab, block_rows)  # HBM-roofline identity copy
    return jnp.reshape(slab, target_shape)         # bitcast under jit


class Reshape:
    """JAX/Pallas equivalent of the PyTorch Reshape module.

    forward(x):
      - if shape is None: returns x viewed as (x.shape[0], -1)
      - else:             returns x viewed as (x.shape[0], *shape)
    """

    def __init__(self, shape=None):
        self.shape = shape

    def _resolve_target(self, x_shape):
        B = x_shape[0]
        numel = 1
        for d in x_shape[1:]:
            numel *= d
        if self.shape is None:
            return (B, numel)
        dims = list(self.shape)
        if -1 in dims:                      # support torch.view-style -1
            idx = dims.index(-1)
            known = 1
            for j, d in enumerate(dims):
                if j != idx:
                    known *= d
            dims[idx] = numel // known
        return (B, *dims)

    def __call__(self, x):
        target_shape = self._resolve_target(x.shape)
        return _reshape_forward(x, target_shape)


if __name__ == "__main__":
    key = jax.random.PRNGKey(0)
    # Small conv-style input: (B, C, H, W)
    x = jax.random.normal(key, (2, 4, 16, 16), dtype=jnp.float32)

    # Case 1: shape=None -> (B, C*H*W)
    mod_flat = Reshape(shape=None)
    y_flat = jax.block_until_ready(mod_flat(x))
    assert y_flat.shape == (2, 4 * 16 * 16)
    assert jnp.array_equal(y_flat, x.reshape(2, -1))

    # Case 2: explicit target shape -> (B, *shape)
    mod_shaped = Reshape(shape=(16, 64))
    y_shaped = jax.block_until_ready(mod_shaped(x))
    assert y_shaped.shape == (2, 16, 64)
    assert jnp.array_equal(y_shaped, x.reshape(2, 16, 64))

    # Case 3: shape with -1, like torch .view
    mod_neg = Reshape(shape=(4, -1))
    y_neg = jax.block_until_ready(mod_neg(x))
    assert y_neg.shape == (2, 4, 256)
    assert jnp.array_equal(y_neg, x.reshape(2, 4, 256))

    # Case 4: element count not tileable lane-dense -> metadata-only fallback
    x_odd = jax.random.normal(key, (2, 3, 5, 7), dtype=jnp.float32)
    y_odd = jax.block_until_ready(Reshape(None)(x_odd))
    assert y_odd.shape == (2, 105)
    assert jnp.array_equal(y_odd, x_odd.reshape(2, -1))

    print("KERNEL_OK")
</pallas_src>

<mosaic_0001>
module attributes {stable_mosaic.version = 11 : i64} {
  func.func @_copy_kernel(%arg0: i32, %arg1: memref<8x256xf32, #tpu.memory_space<vmem>>, %arg2: memref<8x256xf32, #tpu.memory_space<vmem>>) attributes {dimension_semantics = [#tpu.dimension_semantics<parallel>], iteration_bounds = array<i64: 1>, scalar_prefetch = 0 : i64, scratch_operands = 0 : i64, tpu.core_type = #tpu.core_type<tc>, window_params = [{transform_indices = @transform_0, window_bounds = array<i64: 8, 256>}, {transform_indices = @transform_1, window_bounds = array<i64: 8, 256>}]} {
    %c0 = arith.constant 0 : index
    %c0_0 = arith.constant 0 : index
    %0 = vector.load %arg1[%c0, %c0_0] : memref<8x256xf32, #tpu.memory_space<vmem>>, vector<8x256xf32>
    %c0_1 = arith.constant 0 : index
    %c0_2 = arith.constant 0 : index
    %1 = vector.load %arg2[%c0_1, %c0_2] : memref<8x256xf32, #tpu.memory_space<vmem>>, vector<8x256xf32>
    tpu.vector_store %arg2[%c0_1, %c0_2], %0 {strides = array<i32>} : memref<8x256xf32, #tpu.memory_space<vmem>>, vector<8x256xf32>,
    return
  }
  func.func @transform_0(%arg0: i32) -> (i32, i32) {
    %c0_i32 = arith.constant 0 : i32
    %c0_i32_0 = arith.constant 0 : i32
    return %arg0, %c0_i32 : i32, i32
  }
  func.func @transform_1(%arg0: i32) -> (i32, i32) {
    %c0_i32 = arith.constant 0 : i32
    %c0_i32_0 = arith.constant 0 : i32
    return %arg0, %c0_i32 : i32, i32
  }
}

</mosaic_0001>

<llo_original>
// kernel: _reshape_forward.1
$region0: #{_reshape_forward.1}
  #allocation0 [shape = 'u32[]', space=smem, size = 0x4, offset = 0x4, fixed_abs, tag = 'smem constant byte address 0x4 - core index']
  #allocation1 [shape = 'u32[144,128]{1,0:T(1,128)}', space=vmem, size = 0x12000, scoped, tag = 'internal scratch']
  %s0 = inlined_call_operand.vmem [shape: f32[8,256], index: 0, kind: input, shape index: {}]
  %s1 = inlined_call_operand.vmem [shape: f32[8,256], index: 1, kind: output, shape index: {}]
  %s2 = sld [smem:[#allocation0]]
  $region14: #{_reshape_forward.1} parent=0
    _
  %s4 = ssub.s32 1, %s2
  %s5 = scalar_select 0, %s4, %s2
  // Predicated region
  $region2: #{_reshape_forward.1} parent=0 // pred_check
    _
  $region3: #{_reshape_forward.1} parent=0 // pred_check_branch
    %7 = sbr.rel (0) target = $region5
  $region4: #{_reshape_forward.1} parent=0 // pred_region
    _
  $region5: #{_reshape_forward.1} parent=0 // pred_fallthru
    _
  %v8 = vld [vmem:[%s0] sm:$0xff]
  %v9 = vld [vmem:[%s0 + $0x8] sm:$0xff]
  %10 = vst [vmem:[%s1] sm:$0xff] %v8
  %11 = vst [vmem:[%s1 + $0x8] sm:$0xff] %v9
  // Predicated region
  $region6: #{_reshape_forward.1} parent=0 // pred_check
    _
  $region7: #{_reshape_forward.1} parent=0 // pred_check_branch
    %13 = sbr.rel (0) target = $region9
  $region8: #{_reshape_forward.1} parent=0 // pred_region
    _
  $region9: #{_reshape_forward.1} parent=0 // pred_fallthru
    _
  // Predicated region
  $region10: #{_reshape_forward.1} parent=0 // pred_check
    _
  $region11: #{_reshape_forward.1} parent=0 // pred_check_branch
    %15 = sbr.rel (0) target = $region13
  $region12: #{_reshape_forward.1} parent=0 // pred_region
    _
  $region13: #{_reshape_forward.1} parent=0 // pred_fallthru
    _

</llo_original>
